<compile_context>
chip_gen: v5e
topology: v5e:2x2
jax: 0.10.0
libtpu: 0.0.40
codegen_flags: <defaults>
</compile_context>

<pallas_src>
import math

import jax
import jax.numpy as jnp
from jax.experimental import pallas as pl
from jax.experimental.pallas import tpu as pltpu


def _round_up(x: int, m: int) -> int:
    return ((x + m - 1) // m) * m


def _pad2(a, rows: int, cols: int):
    pr, pc = rows - a.shape[0], cols - a.shape[1]
    if pr == 0 and pc == 0:
        return a
    return jnp.pad(a, ((0, pr), (0, pc)))


def _ff_kernel(x_ref, w1_ref, b1_ref, w2_ref, b2_ref, o_ref, acc_ref):
    """One (row-tile, hidden-tile) step of relu(x@W1 + b1) @ W2 + b2.

    Grid axis 1 (hidden) is a reduction axis; acc_ref is an f32 accumulator
    that lives across the hidden steps of a given row tile.
    """
    h = pl.program_id(1)

    @pl.when(h == 0)
    def _init():
        # Fold the output bias in once (not once per hidden tile).
        acc_ref[...] = jnp.broadcast_to(
            b2_ref[...].astype(jnp.float32), acc_ref.shape)

    hid = jnp.dot(x_ref[...], w1_ref[...], preferred_element_type=jnp.float32)
    hid = jnp.maximum(hid + b1_ref[...].astype(jnp.float32), 0.0)
    acc_ref[...] += jnp.dot(hid.astype(w2_ref.dtype), w2_ref[...],
                            preferred_element_type=jnp.float32)

    @pl.when(h == pl.num_programs(1) - 1)
    def _finalize():
        o_ref[...] = acc_ref[...].astype(o_ref.dtype)


def feed_forward(x, w1, b1, w2, b2, *, tm=256, th=512,
                 compute_dtype=jnp.bfloat16):
    """x: (batch, seq, d_model) -> (batch, seq, d_model).

    w1: (d_model, d_hidden), b1: (d_hidden,) or (1, d_hidden)
    w2: (d_hidden, d_model), b2: (d_model,) or (1, d_model)
    """
    batch, seq, d_model = x.shape
    d_hidden = w1.shape[1]
    M = batch * seq

    b1 = b1.reshape(1, -1)
    b2 = b2.reshape(1, -1)

    # --- tile / padding selection -------------------------------------------
    row_align = 16 if compute_dtype == jnp.bfloat16 else 8
    tm_eff = min(tm, _round_up(M, row_align))          # don't over-tile tiny inputs
    th_eff = min(th, _round_up(d_hidden, 128))         # hidden tile, lane aligned
    dmp = _round_up(d_model, 128)                      # lane-dense output columns
    m_pad = _round_up(M, tm_eff)
    h_pad = _round_up(d_hidden, th_eff)

    # --- pad + cast operands -------------------------------------------------
    x2 = _pad2(x.reshape(M, d_model), m_pad, dmp).astype(compute_dtype)
    w1p = _pad2(w1, dmp, h_pad).astype(compute_dtype)
    w2p = _pad2(w2, h_pad, dmp).astype(compute_dtype)
    b1p = _pad2(b1, 1, h_pad).astype(jnp.float32)
    b2p = _pad2(b2, 1, dmp).astype(jnp.float32)

    grid = (m_pad // tm_eff, h_pad // th_eff)

    # --- VMEM budget (double-buffered inputs/outputs + f32 accumulator) -----
    c_it = jnp.dtype(compute_dtype).itemsize
    o_it = jnp.dtype(x.dtype).itemsize
    vmem_bytes = (
        2 * (tm_eff * dmp + dmp * th_eff + th_eff * dmp) * c_it  # x, W1, W2
        + 2 * (th_eff + dmp) * 4                                  # b1, b2
        + 2 * tm_eff * dmp * o_it                                 # output
        + tm_eff * dmp * 4                                        # accumulator
    )
    vmem_limit = min(64 * 1024 * 1024,
                     max(int(1.5 * vmem_bytes), 4 * 1024 * 1024))

    # --- cost hint for XLA scheduling ---------------------------------------
    n_row_blocks = grid[0]
    cost = pl.CostEstimate(
        flops=4 * M * d_model * d_hidden,   # two matmuls
        transcendentals=0,
        bytes_accessed=(x2.size * c_it + m_pad * dmp * o_it
                        + n_row_blocks * (w1p.size + w2p.size) * c_it
                        + n_row_blocks * (b1p.size + b2p.size) * 4),
    )

    out = pl.pallas_call(
        _ff_kernel,
        out_shape=jax.ShapeDtypeStruct((m_pad, dmp), x.dtype),
        grid_spec=pltpu.PrefetchScalarGridSpec(
            num_scalar_prefetch=0,
            grid=grid,
            in_specs=[
                pl.BlockSpec((tm_eff, dmp), lambda i, h: (i, 0)),   # x rows
                pl.BlockSpec((dmp, th_eff), lambda i, h: (0, h)),   # W1 hidden tile
                pl.BlockSpec((1, th_eff), lambda i, h: (0, h)),     # b1 hidden tile
                pl.BlockSpec((th_eff, dmp), lambda i, h: (h, 0)),   # W2 hidden tile
                pl.BlockSpec((1, dmp), lambda i, h: (0, 0)),        # b2
            ],
            out_specs=pl.BlockSpec((tm_eff, dmp), lambda i, h: (i, 0)),
            scratch_shapes=[pltpu.VMEM((tm_eff, dmp), jnp.float32)],
        ),
        compiler_params=pltpu.CompilerParams(
            dimension_semantics=("parallel", "arbitrary"),
            vmem_limit_bytes=vmem_limit),
        cost_estimate=cost,
    )(x2, w1p, b1p, w2p, b2p)

    return out[:M, :d_model].reshape(batch, seq, d_model)


def init_linear_params(key, fan_in, fan_out, dtype=jnp.float32):
    """Match torch.nn.Linear default init (kaiming uniform a=sqrt(5) + uniform bias)."""
    kw, kb = jax.random.split(key)
    bound = 1.0 / math.sqrt(fan_in)
    # stored as (in, out) so the kernel computes x @ W
    w = jax.random.uniform(kw, (fan_in, fan_out), dtype, minval=-bound, maxval=bound)
    b = jax.random.uniform(kb, (1, fan_out), dtype, minval=-bound, maxval=bound)
    return w, b


if __name__ == "__main__":
    batch, seq = 2, 8
    d_model, d_hidden = 32, 64

    key = jax.random.PRNGKey(0)
    kx, k1, k2 = jax.random.split(key, 3)

    x = jax.random.normal(kx, (batch, seq, d_model), jnp.float32)
    w1, b1 = init_linear_params(k1, d_model, d_hidden)
    w2, b2 = init_linear_params(k2, d_hidden, d_model)

    y = feed_forward(x, w1, b1, w2, b2)
    y = jax.block_until_ready(y)
    assert y.shape == (batch, seq, d_model)

    # Reference with matching bf16 matmul inputs and f32 accumulation.
    x2 = x.reshape(-1, d_model)
    hid = jnp.maximum(
        jnp.dot(x2.astype(jnp.bfloat16), w1.astype(jnp.bfloat16),
                preferred_element_type=jnp.float32) + b1, 0.0)
    ref = jnp.dot(hid.astype(jnp.bfloat16), w2.astype(jnp.bfloat16),
                  preferred_element_type=jnp.float32) + b2
    ref = ref.reshape(batch, seq, d_model)
    assert jnp.allclose(y, ref, atol=2e-2, rtol=2e-2), float(
        jnp.max(jnp.abs(y - ref)))

    print("KERNEL_OK")
</pallas_src>

<mosaic_0001>
module attributes {stable_mosaic.version = 11 : i64} {
  func.func @_ff_kernel(%arg0: i32, %arg1: i32, %arg2: memref<16x128xbf16, #tpu.memory_space<vmem>>, %arg3: memref<128x128xbf16, #tpu.memory_space<vmem>>, %arg4: memref<1x128xf32, #tpu.memory_space<vmem>>, %arg5: memref<128x128xbf16, #tpu.memory_space<vmem>>, %arg6: memref<1x128xf32, #tpu.memory_space<vmem>>, %arg7: memref<16x128xf32, #tpu.memory_space<vmem>>, %arg8: memref<16x128xf32, #tpu.memory_space<vmem>>) attributes {dimension_semantics = [#tpu.dimension_semantics<parallel>, #tpu.dimension_semantics<arbitrary>], iteration_bounds = array<i64: 1, 1>, scalar_prefetch = 0 : i64, scratch_operands = 1 : i64, tpu.core_type = #tpu.core_type<tc>, window_params = [{transform_indices = @transform_0, window_bounds = array<i64: 16, 128>}, {transform_indices = @transform_1, window_bounds = array<i64: 128, 128>}, {transform_indices = @transform_2, window_bounds = array<i64: 1, 128>}, {transform_indices = @transform_3, window_bounds = array<i64: 128, 128>}, {pipeline_mode = #tpu.pipeline_mode<synchronous>, transform_indices = @transform_4, window_bounds = array<i64: 1, 128>}, {transform_indices = @transform_5, window_bounds = array<i64: 16, 128>}]} {
    %c0_i32 = arith.constant 0 : i32
    %0 = arith.cmpi eq, %arg1, %c0_i32 : i32
    %1 = arith.extui %0 : i1 to i32
    %c0_i32_0 = arith.constant 0 : i32
    %2 = arith.cmpi ne, %1, %c0_i32_0 : i32
    scf.if %2 {
      %c0_16 = arith.constant 0 : index
      %c0_17 = arith.constant 0 : index
      %20 = vector.load %arg6[%c0_16, %c0_17] : memref<1x128xf32, #tpu.memory_space<vmem>>, vector<1x128xf32>
      %21 = vector.shape_cast %20 : vector<1x128xf32> to vector<1x128xf32>
      %22 = vector.broadcast %21 : vector<1x128xf32> to vector<16x128xf32>
      %c0_18 = arith.constant 0 : index
      %c0_19 = arith.constant 0 : index
      %23 = vector.load %arg8[%c0_18, %c0_19] : memref<16x128xf32, #tpu.memory_space<vmem>>, vector<16x128xf32>
      tpu.vector_store %arg8[%c0_18, %c0_19], %22 {strides = array<i32>} : memref<16x128xf32, #tpu.memory_space<vmem>>, vector<16x128xf32>,
    } else {
    }
    %c0 = arith.constant 0 : index
    %c0_1 = arith.constant 0 : index
    %3 = vector.load %arg2[%c0, %c0_1] : memref<16x128xbf16, #tpu.memory_space<vmem>>, vector<16x128xbf16>
    %c0_2 = arith.constant 0 : index
    %c0_3 = arith.constant 0 : index
    %4 = vector.load %arg3[%c0_2, %c0_3] : memref<128x128xbf16, #tpu.memory_space<vmem>>, vector<128x128xbf16>
    %cst = arith.constant dense<0.000000e+00> : vector<16x128xf32>
    %5 = tpu.matmul %3, %4, %cst {dimension_numbers = #tpu.dot_dimension_numbers<[1], [0], [0], [1], [0, 0, 1, 1], [], []>} : vector<16x128xbf16>, vector<128x128xbf16>, vector<16x128xf32> -> vector<16x128xf32>
    %c0_4 = arith.constant 0 : index
    %c0_5 = arith.constant 0 : index
    %6 = vector.load %arg4[%c0_4, %c0_5] : memref<1x128xf32, #tpu.memory_space<vmem>>, vector<1x128xf32>
    %7 = vector.broadcast %6 : vector<1x128xf32> to vector<16x128xf32>
    %8 = arith.addf %5, %7 : vector<16x128xf32>
    %cst_6 = arith.constant 0.000000e+00 : f32
    %9 = vector.broadcast %cst_6 : f32 to vector<16x128xf32>
    %10 = arith.maximumf %8, %9 : vector<16x128xf32>
    %c0_7 = arith.constant 0 : index
    %c0_8 = arith.constant 0 : index
    %11 = vector.load %arg8[%c0_7, %c0_8] : memref<16x128xf32, #tpu.memory_space<vmem>>, vector<16x128xf32>
    %12 = arith.truncf %10 : vector<16x128xf32> to vector<16x128xbf16>
    %c0_9 = arith.constant 0 : index
    %c0_10 = arith.constant 0 : index
    %13 = vector.load %arg5[%c0_9, %c0_10] : memref<128x128xbf16, #tpu.memory_space<vmem>>, vector<128x128xbf16>
    %cst_11 = arith.constant dense<0.000000e+00> : vector<16x128xf32>
    %14 = tpu.matmul %12, %13, %cst_11 {dimension_numbers = #tpu.dot_dimension_numbers<[1], [0], [0], [1], [0, 0, 1, 1], [], []>} : vector<16x128xbf16>, vector<128x128xbf16>, vector<16x128xf32> -> vector<16x128xf32>
    %15 = arith.addf %11, %14 : vector<16x128xf32>
    %c0_12 = arith.constant 0 : index
    %c0_13 = arith.constant 0 : index
    %16 = vector.load %arg8[%c0_12, %c0_13] : memref<16x128xf32, #tpu.memory_space<vmem>>, vector<16x128xf32>
    tpu.vector_store %arg8[%c0_12, %c0_13], %15 {strides = array<i32>} : memref<16x128xf32, #tpu.memory_space<vmem>>, vector<16x128xf32>,
    %c0_i32_14 = arith.constant 0 : i32
    %17 = arith.cmpi eq, %arg1, %c0_i32_14 : i32
    %18 = arith.extui %17 : i1 to i32
    %c0_i32_15 = arith.constant 0 : i32
    %19 = arith.cmpi ne, %18, %c0_i32_15 : i32
    scf.if %19 {
      %c0_16 = arith.constant 0 : index
      %c0_17 = arith.constant 0 : index
      %20 = vector.load %arg8[%c0_16, %c0_17] : memref<16x128xf32, #tpu.memory_space<vmem>>, vector<16x128xf32>
      %c0_18 = arith.constant 0 : index
      %c0_19 = arith.constant 0 : index
      %21 = vector.load %arg7[%c0_18, %c0_19] : memref<16x128xf32, #tpu.memory_space<vmem>>, vector<16x128xf32>
      tpu.vector_store %arg7[%c0_18, %c0_19], %20 {strides = array<i32>} : memref<16x128xf32, #tpu.memory_space<vmem>>, vector<16x128xf32>,
    } else {
    }
    return
  }
  func.func @transform_0(%arg0: i32, %arg1: i32) -> (i32, i32) {
    %c0_i32 = arith.constant 0 : i32
    %c0_i32_0 = arith.constant 0 : i32
    return %arg0, %c0_i32 : i32, i32
  }
  func.func @transform_1(%arg0: i32, %arg1: i32) -> (i32, i32) {
    %c0_i32 = arith.constant 0 : i32
    %c0_i32_0 = arith.constant 0 : i32
    return %c0_i32, %arg1 : i32, i32
  }
  func.func @transform_2(%arg0: i32, %arg1: i32) -> (i32, i32) {
    %c0_i32 = arith.constant 0 : i32
    %c0_i32_0 = arith.constant 0 : i32
    return %c0_i32, %arg1 : i32, i32
  }
  func.func @transform_3(%arg0: i32, %arg1: i32) -> (i32, i32) {
    %c0_i32 = arith.constant 0 : i32
    %c0_i32_0 = arith.constant 0 : i32
    return %arg1, %c0_i32 : i32, i32
  }
  func.func @transform_4(%arg0: i32, %arg1: i32) -> (i32, i32) {
    %c0_i32 = arith.constant 0 : i32
    %c0_i32_0 = arith.constant 0 : i32
    %c0_i32_1 = arith.constant 0 : i32
    return %c0_i32, %c0_i32_0 : i32, i32
  }
  func.func @transform_5(%arg0: i32, %arg1: i32) -> (i32, i32) {
    %c0_i32 = arith.constant 0 : i32
    %c0_i32_0 = arith.constant 0 : i32
    return %arg0, %c0_i32 : i32, i32
  }
}

</mosaic_0001>

<llo_original>
// kernel: tpu_custom_call.1
$region0: #{tpu_custom_call.1}
  #allocation0 [shape = 'u32[]', space=smem, size = 0x4, offset = 0x4, fixed_abs, tag = 'smem constant byte address 0x4 - core index']
  #allocation1 [shape = 'u32[72,128]{1,0:T(1,128)}', space=vmem, size = 0x9000, scoped, tag = 'internal scratch']
  #allocation2 [shape = 'f32[16,128]{1,0:T(8,128)}', space=vmem, size = 0x2000, scoped, tag = 'scratch operand']
  %s0 = inlined_call_operand.hbm [shape: bf16[16,128], index: 0, kind: input, shape index: {}]
  %s1 = inlined_call_operand.hbm [shape: bf16[128,128], index: 1, kind: input, shape index: {}]
  %s2 = inlined_call_operand.vmem [shape: f32[1,128], index: 2, kind: input, shape index: {}]
  %s3 = inlined_call_operand.hbm [shape: bf16[128,128], index: 3, kind: input, shape index: {}]
  %s4 = inlined_call_operand.vmem [shape: f32[1,128], index: 4, kind: input, shape index: {}]
  %s5 = inlined_call_operand.hbm [shape: f32[16,128], index: 5, kind: output, shape index: {}]
  %s6 = sld [smem:[#allocation0]]
  $region50: #{tpu_custom_call.1} parent=0
    _
  %s8 = ssub.s32 1, %s6
  %s9 = scalar_select 0, %s8, %s6
  $region1: #{tpu_custom_call.1} parent=0
    #allocation3 [shape = 'u8[4096]{0}', space=vmem, size = 0x1000, scoped, tag = 'input window, operand 0, single buffered']
    #allocation4 [shape = 's32[1]{0}', space=sflag, size = 0x4, scoped, tag = 'scoped memory for tpu_custom_call.1']
    #allocation5 [shape = 's32[1]{0}', space=sflag, size = 0x4, scoped, tag = 'scoped memory for tpu_custom_call.1']
    #allocation6 [shape = 'u8[32768]{0}', space=vmem, size = 0x8000, scoped, tag = 'input window, operand 1, single buffered']
    #allocation7 [shape = 's32[1]{0}', space=sflag, size = 0x4, scoped, tag = 'scoped memory for tpu_custom_call.1']
    #allocation8 [shape = 'u8[32768]{0}', space=vmem, size = 0x8000, scoped, tag = 'input window, operand 3, single buffered']
    #allocation9 [shape = 'u8[8192]{0}', space=vmem, size = 0x2000, scoped, tag = 'output window, operand 0, single buffered']
    %10 = vsyncpa [#allocation4], 0
    %11 = vsyncpa [#allocation7], 0
    %12 = vsyncpa [#allocation5], 0
    // Predicated region
    $region2: #{tpu_custom_call.1} parent=1 // pred_check
      _
    $region3: #{tpu_custom_call.1} parent=1 // pred_check_branch
      %14 = sbr.rel (0) target = $region5
    $region4: #{tpu_custom_call.1} parent=1 // pred_region
      %16 = vsyncadd [#allocation4], 0
      %s17 = sshll.u32 %s0, 4
      %s18 = int_to_ptr.hbm [resolvable:$true] %s17
      %s19 = sshll.u32 [#allocation3], 4
      %s20 = int_to_ptr.vmem [resolvable:$true] %s19
      %25 = dma.hbm_to_vmem [thread:$0]  %s18, 128, %s20, [#allocation4], 64, 64, 4
    $region5: #{tpu_custom_call.1} parent=1 // pred_fallthru
      _
    // Predicated region
    $region6: #{tpu_custom_call.1} parent=1 // pred_check
      _
    $region7: #{tpu_custom_call.1} parent=1 // pred_check_branch
      %27 = sbr.rel (0) target = $region9
    $region8: #{tpu_custom_call.1} parent=1 // pred_region
      %29 = vsyncadd [#allocation7], 0
      %s30 = sshll.u32 %s1, 4
      %s31 = int_to_ptr.hbm [resolvable:$true] %s30
      %s32 = sshll.u32 [#allocation6], 4
      %s33 = int_to_ptr.vmem [resolvable:$true] %s32
      %38 = dma.hbm_to_vmem [thread:$0]  %s31, 1024, %s33, [#allocation7], 64, 64, 4
    $region9: #{tpu_custom_call.1} parent=1 // pred_fallthru
      _
    // Predicated region
    $region10: #{tpu_custom_call.1} parent=1 // pred_check
      _
    $region11: #{tpu_custom_call.1} parent=1 // pred_check_branch
      %40 = sbr.rel (0) target = $region13
    $region12: #{tpu_custom_call.1} parent=1 // pred_region
      _
    $region13: #{tpu_custom_call.1} parent=1 // pred_fallthru
      _
    // Predicated region
    $region14: #{tpu_custom_call.1} parent=1 // pred_check
      _
    $region15: #{tpu_custom_call.1} parent=1 // pred_check_branch
      %42 = sbr.rel (0) target = $region17
    $region16: #{tpu_custom_call.1} parent=1 // pred_region
      %44 = vsyncadd [#allocation7], 0
      %s45 = sshll.u32 %s3, 4
      %s46 = int_to_ptr.hbm [resolvable:$true] %s45
      %s47 = sshll.u32 [#allocation8], 4
      %s48 = int_to_ptr.vmem [resolvable:$true] %s47
      %53 = dma.hbm_to_vmem [thread:$0]  %s46, 1024, %s48, [#allocation7], 64, 64, 4
    $region17: #{tpu_custom_call.1} parent=1 // pred_fallthru
      _
    // Predicated region
    $region18: #{tpu_custom_call.1} parent=1 // pred_check
      _
    $region19: #{tpu_custom_call.1} parent=1 // pred_check_branch
      %55 = sbr.rel (0) target = $region21
    $region20: #{tpu_custom_call.1} parent=1 // pred_region
      _
    $region21: #{tpu_custom_call.1} parent=1 // pred_fallthru
      _
    // Predicated region
    $region22: #{tpu_custom_call.1} parent=1 // pred_check
      _
    $region23: #{tpu_custom_call.1} parent=1 // pred_check_branch
      %57 = sbr.rel (0) target = $region25
    $region24: #{tpu_custom_call.1} parent=1 // pred_region
      %59 = dma.done [#allocation4], 128
    $region25: #{tpu_custom_call.1} parent=1 // pred_fallthru
      _
    // Predicated region
    $region26: #{tpu_custom_call.1} parent=1 // pred_check
      _
    $region27: #{tpu_custom_call.1} parent=1 // pred_check_branch
      %61 = sbr.rel (0) target = $region29
    $region28: #{tpu_custom_call.1} parent=1 // pred_region
      %63 = dma.done [#allocation7], 1024
    $region29: #{tpu_custom_call.1} parent=1 // pred_fallthru
      _
    // Predicated region
    $region30: #{tpu_custom_call.1} parent=1 // pred_check
      _
    $region31: #{tpu_custom_call.1} parent=1 // pred_check_branch
      %65 = sbr.rel (0) target = $region33
    $region32: #{tpu_custom_call.1} parent=1 // pred_region
      %67 = dma.done [#allocation7], 1024
    $region33: #{tpu_custom_call.1} parent=1 // pred_fallthru
      _
    %p68 = scmp.eq.s32.totalorder 0, 0
    // Predicated region
    $region34: #{tpu_custom_call.1} parent=1 // pred_check
      %p69 = pneg %p68
    $region35: #{tpu_custom_call.1} parent=1 // pred_check_branch
      %71 = sbr.rel (%p69) target = $region37
    $region36: #{tpu_custom_call.1} parent=1 // pred_region
      %v72 = vld [vmem:[%s4] sm:$0x1]
      %v74 = vperm.slane %v72, 0
      %76 = vst [vmem:[#allocation2] sm:$0xff] %v74
      %77 = vst [vmem:[#allocation2 + $0x8] sm:$0xff] %v74
    $region37: #{tpu_custom_call.1} parent=1 // pred_fallthru
      _
    %v78 = vld [vmem:[#allocation3] sm:$0xf]
    %v79 = vld [vmem:[#allocation3 + $0x4] sm:$0xf]
    %v80 = vld [vmem:[#allocation6] sm:$0xf]
    %v81 = vld [vmem:[#allocation6 + $0x4] sm:$0xf]
    %v82 = vld [vmem:[#allocation6 + $0x8] sm:$0xf]
    %v83 = vld [vmem:[#allocation6 + $0xc] sm:$0xf]
    %v84 = vld [vmem:[#allocation6 + $0x10] sm:$0xf]
    %v85 = vld [vmem:[#allocation6 + $0x14] sm:$0xf]
    %v86 = vld [vmem:[#allocation6 + $0x18] sm:$0xf]
    %v87 = vld [vmem:[#allocation6 + $0x1c] sm:$0xf]
    %v88 = vld [vmem:[#allocation6 + $0x20] sm:$0xf]
    %v89 = vld [vmem:[#allocation6 + $0x24] sm:$0xf]
    %v90 = vld [vmem:[#allocation6 + $0x28] sm:$0xf]
    %v91 = vld [vmem:[#allocation6 + $0x2c] sm:$0xf]
    %v92 = vld [vmem:[#allocation6 + $0x30] sm:$0xf]
    %v93 = vld [vmem:[#allocation6 + $0x34] sm:$0xf]
    %v94 = vld [vmem:[#allocation6 + $0x38] sm:$0xf]
    %v95 = vld [vmem:[#allocation6 + $0x3c] sm:$0xf]
    %v96 = vld [vmem:[%s2] sm:$0x1]
    %v98 = vperm.slane %v96, 0
    %v102 = vunpack.c.l.b16 %v78
    %v103 = vunpack.c.l.b16 %v79
    %v104 = vpack.c.b16 %v103, %v102
    %v122 = vunpack.c.l.b16 %v80
    %v123 = vunpack.c.l.b16 %v81
    %v124 = vunpack.c.l.b16 %v82
    %v125 = vunpack.c.l.b16 %v83
    %v126 = vunpack.c.l.b16 %v84
    %v127 = vunpack.c.l.b16 %v85
    %v128 = vunpack.c.l.b16 %v86
    %v129 = vunpack.c.l.b16 %v87
    %v130 = vunpack.c.l.b16 %v88
    %v131 = vunpack.c.l.b16 %v89
    %v132 = vunpack.c.l.b16 %v90
    %v133 = vunpack.c.l.b16 %v91
    %v134 = vunpack.c.l.b16 %v92
    %v135 = vunpack.c.l.b16 %v93
    %v136 = vunpack.c.l.b16 %v94
    %v137 = vunpack.c.l.b16 %v95
    %v138 = vpack.c.b16 %v123, %v122
    %v139 = vpack.c.b16 %v125, %v124
    %v140 = vpack.c.b16 %v127, %v126
    %v141 = vpack.c.b16 %v129, %v128
    %v142 = vpack.c.b16 %v131, %v130
    %v143 = vpack.c.b16 %v133, %v132
    %v144 = vpack.c.b16 %v135, %v134
    %v145 = vpack.c.b16 %v137, %v136
    %154 = vmatpush.bf16.msra.mxu0 %v145
    %155 = vmatpush.bf16.msra.mxu0 %v144
    %156 = vmatpush.bf16.msra.mxu0 %v143
    %157 = vmatpush.bf16.msra.mxu0 %v142
    %158 = vmatpush.bf16.msra.mxu0 %v141
    %159 = vmatpush.bf16.msra.mxu0 %v140
    %160 = vmatpush.bf16.msra.mxu0 %v139
    %161 = vmatpush.bf16.msra.mxu0 %v138
    %162 = vmatmul.bf16.gmra.mxu0 %v104
    %v163 = vpop.f32.mrf.mxu0
    %v164 = vadd.f32 %v98, %v163
    %v165 = vpop.f32.mrf.mxu0
    %v166 = vadd.f32 %v98, %v165
    %167 = vdwg.mxu0
    %v168 = vmax.f32 %v164, 0.0
    %v169 = vmax.f32 %v166, 0.0
    %v170 = vld [vmem:[#allocation2] sm:$0xff]
    %v171 = vld [vmem:[#allocation2 + $0x8] sm:$0xff]
    %v172 = vpack.c.bf16 %v169, %v168
    %v173 = vld [vmem:[#allocation8] sm:$0xf]
    %v174 = vld [vmem:[#allocation8 + $0x4] sm:$0xf]
    %v175 = vld [vmem:[#allocation8 + $0x8] sm:$0xf]
    %v176 = vld [vmem:[#allocation8 + $0xc] sm:$0xf]
    %v177 = vld [vmem:[#allocation8 + $0x10] sm:$0xf]
    %v178 = vld [vmem:[#allocation8 + $0x14] sm:$0xf]
    %v179 = vld [vmem:[#allocation8 + $0x18] sm:$0xf]
    %v180 = vld [vmem:[#allocation8 + $0x1c] sm:$0xf]
    %v181 = vld [vmem:[#allocation8 + $0x20] sm:$0xf]
    %v182 = vld [vmem:[#allocation8 + $0x24] sm:$0xf]
    %v183 = vld [vmem:[#allocation8 + $0x28] sm:$0xf]
    %v184 = vld [vmem:[#allocation8 + $0x2c] sm:$0xf]
    %v185 = vld [vmem:[#allocation8 + $0x30] sm:$0xf]
    %v186 = vld [vmem:[#allocation8 + $0x34] sm:$0xf]
    %v187 = vld [vmem:[#allocation8 + $0x38] sm:$0xf]
    %v188 = vld [vmem:[#allocation8 + $0x3c] sm:$0xf]
    %v205 = vunpack.c.l.b16 %v173
    %v206 = vunpack.c.l.b16 %v174
    %v207 = vunpack.c.l.b16 %v175
    %v208 = vunpack.c.l.b16 %v176
    %v209 = vunpack.c.l.b16 %v177
    %v210 = vunpack.c.l.b16 %v178
    %v211 = vunpack.c.l.b16 %v179
    %v212 = vunpack.c.l.b16 %v180
    %v213 = vunpack.c.l.b16 %v181
    %v214 = vunpack.c.l.b16 %v182
    %v215 = vunpack.c.l.b16 %v183
    %v216 = vunpack.c.l.b16 %v184
    %v217 = vunpack.c.l.b16 %v185
    %v218 = vunpack.c.l.b16 %v186
    %v219 = vunpack.c.l.b16 %v187
    %v220 = vunpack.c.l.b16 %v188
    %v221 = vpack.c.b16 %v206, %v205
    %v222 = vpack.c.b16 %v208, %v207
    %v223 = vpack.c.b16 %v210, %v209
    %v224 = vpack.c.b16 %v212, %v211
    %v225 = vpack.c.b16 %v214, %v213
    %v226 = vpack.c.b16 %v216, %v215
    %v227 = vpack.c.b16 %v218, %v217
    %v228 = vpack.c.b16 %v220, %v219
    %237 = vmatpush.bf16.msra.mxu0 %v228
    %238 = vmatpush.bf16.msra.mxu0 %v227
    %239 = vmatpush.bf16.msra.mxu0 %v226
    %240 = vmatpush.bf16.msra.mxu0 %v225
    %241 = vmatpush.bf16.msra.mxu0 %v224
    %242 = vmatpush.bf16.msra.mxu0 %v223
    %243 = vmatpush.bf16.msra.mxu0 %v222
    %244 = vmatpush.bf16.msra.mxu0 %v221
    %245 = vmatmul.bf16.gmra.mxu0 %v172
    %v246 = vpop.f32.mrf.mxu0
    %v247 = vadd.f32 0.0, %v246
    %v248 = vpop.f32.mrf.mxu0
    %v249 = vadd.f32 0.0, %v248
    %250 = vdwg.mxu0
    %v251 = vadd.f32 %v170, %v247
    %v252 = vadd.f32 %v171, %v249
    %253 = vst [vmem:[#allocation2] sm:$0xff] %v251
    %254 = vst [vmem:[#allocation2 + $0x8] sm:$0xff] %v252
    // Predicated region
    $region38: #{tpu_custom_call.1} parent=1 // pred_check
      %p255 = pneg %p68
    $region39: #{tpu_custom_call.1} parent=1 // pred_check_branch
      %257 = sbr.rel (%p255) target = $region41
    $region40: #{tpu_custom_call.1} parent=1 // pred_region
      %v258 = vld [vmem:[#allocation2] sm:$0xff]
      %v259 = vld [vmem:[#allocation2 + $0x8] sm:$0xff]
      %260 = vst [vmem:[#allocation9] sm:$0xff] %v258
      %261 = vst [vmem:[#allocation9 + $0x8] sm:$0xff] %v259
    $region41: #{tpu_custom_call.1} parent=1 // pred_fallthru
      _
    // Predicated region
    $region42: #{tpu_custom_call.1} parent=1 // pred_check
      _
    $region43: #{tpu_custom_call.1} parent=1 // pred_check_branch
      %263 = sbr.rel (0) target = $region45
    $region44: #{tpu_custom_call.1} parent=1 // pred_region
      %265 = vsyncadd [#allocation5], 0
      %s266 = sshll.u32 [#allocation9], 4
      %s267 = int_to_ptr.vmem [resolvable:$true] %s266
      %s268 = sshll.u32 %s5, 4
      %s269 = int_to_ptr.hbm [resolvable:$true] %s268
      %274 = dma.vmem_to_hbm [thread:$0]  %s267, 256, %s269, [#allocation5], 128, 128, 8
    $region45: #{tpu_custom_call.1} parent=1 // pred_fallthru
      _
    // Predicated region
    $region46: #{tpu_custom_call.1} parent=1 // pred_check
      _
    $region47: #{tpu_custom_call.1} parent=1 // pred_check_branch
      %276 = sbr.rel (0) target = $region49
    $region48: #{tpu_custom_call.1} parent=1 // pred_region
      %278 = dma.done [#allocation5], 256
    $region49: #{tpu_custom_call.1} parent=1 // pred_fallthru
      _
    %279 = vsyncpa [#allocation4], 1
    %280 = vsyncpa [#allocation7], 1
    %281 = vsyncpa [#allocation5], 1

</llo_original>
